<compile_context>
chip_gen: v5e
topology: v5e:2x2
jax: 0.10.0
libtpu: 0.0.40
codegen_flags: <defaults>
</compile_context>

<pallas_src>
import functools

import jax
import jax.numpy as jnp
import numpy as np
from jax.experimental import pallas as pl
from jax.experimental.pallas import tpu as pltpu

LANE = 128  # lane width of the per-tile partial-sum outputs


def _round_up(x, m):
    return ((x + m - 1) // m) * m


def _multi_nll_kernel(tgt_ref, *refs, num_groups, ignore_index):
    """One N-tile, all G groups fused.

    tgt_ref   : (TN, G)    int32 targets (tail rows padded with ignore_index)
    refs[:G]  : (TN, C_g)  native-dtype (bf16/f32) log-probabilities per group
    refs[G:]  : (1,1,LANE) f32 per-tile partial sum of -logp[n, tgt[n,g]]
    """
    logp_refs = refs[:num_groups]
    sum_refs = refs[num_groups:]

    tgt = tgt_ref[...]                                   # (TN, G) int32
    tn, g_total = tgt.shape

    # Fold validity into the target once per row: ignored rows become class -1,
    # which never matches the class iota -> no per-element '& valid' and no
    # tail-row mask (wrapper pads the target tail with ignore_index).
    # NOTE: out-of-range targets (not ignore_index) contribute 0 to the sum
    # but still count as valid rows; torch F.nll_loss would raise instead.
    safe = jnp.where(tgt == ignore_index, -1, tgt)       # (TN, G)
    grp_iota = jax.lax.broadcasted_iota(jnp.int32, (tn, g_total), 1)

    for g in range(num_groups):
        logp = logp_refs[g][...]                         # (TN, C_g) bf16/f32
        c = logp.shape[1]

        # Column g of the target as a per-row scalar via a cheap masked
        # lane-reduce over the G (<128) target lanes (XLU slot, avoids
        # unaligned lane slicing).
        t_g = jnp.sum(jnp.where(grp_iota == g, safe, 0),
                      axis=1, keepdims=True)             # (TN, 1) int32

        # TODO(synk): for C_g < 128 the tile is lane-padded; folding rows into
        # lanes (e.g. (N,64)->(N/2,128)) would halve vld/VPU work on v7x.
        col = jax.lax.broadcasted_iota(jnp.int32, (tn, c), 1)
        hit = col == t_g                                 # (TN, C_g) bool

        # Select in native dtype, accumulate the reduce in float32.
        picked = jnp.where(hit, logp, jnp.zeros_like(logp))
        s = jnp.sum(picked, dtype=jnp.float32, keepdims=True)   # (1, 1) f32

        sum_refs[g][0] = jnp.broadcast_to(-s, (1, LANE))


def _choose_tile_n(n, num_groups, class_counts, itemsizes,
                   *, budget_bytes=8 << 20, max_tn=8192):
    """Rows per tile against a per-buffer VMEM budget with lane-padded
    accounting (every (TN, C) block is physically padded to 128 lanes) and a
    sublane multiple matching the narrowest input dtype."""
    per_row = _round_up(num_groups, LANE) * 4            # lane-padded int32 tgt
    min_sub = 8                                          # int32 target rows
    for c, isz in zip(class_counts, itemsizes):
        per_row += _round_up(c, LANE) * isz
        min_sub = max(min_sub, 8 * max(1, 4 // isz))     # f32:8 bf16:16 int8:32

    tn = min(max_tn, budget_bytes // per_row)
    tn = max(min_sub, (tn // min_sub) * min_sub)
    if tn >= n:
        # Whole batch fits one tile: split in two when possible so both v7x
        # TensorCores get work under dimension_semantics=("parallel",).
        half = _round_up(pl.cdiv(n, 2), min_sub)
        tn = half if half < n else n                     # tn == n: full-dim block
    return tn, per_row


def multi_nll_loss(inputs, target, *, ignore_index=-100, reduction="mean"):
    """Pallas equivalent of MultiNLLLoss.forward.

    inputs : sequence of G arrays, each (N, C_g) of log-probabilities
             (native dtype streamed once; no upcast / no stacking).
    target : (N, G) integer class indices (ignore_index marks ignored entries).
    """
    if reduction not in ("mean", "sum"):
        # TODO(synk): reduction='none' (per-sample loss tensors) not implemented.
        raise NotImplementedError(f"reduction={reduction!r} not supported")
    # TODO(synk): vocab-scale C (MiB-scale rows) would additionally need a
    # C-tile grid axis; not needed for the class counts this module targets.

    num_groups = len(inputs)
    n = inputs[0].shape[0]
    class_counts = [int(x.shape[1]) for x in inputs]
    itemsizes = [jnp.dtype(x.dtype).itemsize for x in inputs]

    target = target.astype(jnp.int32)
    # Valid counts depend only on the tiny target array -> plain JAX.
    counts = jnp.sum((target != ignore_index).astype(jnp.float32), axis=0)  # (G,)

    tn, per_row = _choose_tile_n(n, num_groups, class_counts, itemsizes)
    num_tiles = pl.cdiv(n, tn)
    n_pad = num_tiles * tn

    # Pad the target tail with ignore_index so garbage rows of partial last
    # log-prob tiles never match -> no in-kernel tail test.
    if n_pad > n:
        pad = jnp.full((n_pad - n, num_groups), ignore_index, dtype=jnp.int32)
        target_p = jnp.concatenate([target, pad], axis=0)
    else:
        target_p = target

    # Double-buffered, lane-padded inputs + tiny outputs + slack; clamp to
    # <=32 MiB (safe on v7x's 64 MiB physical VMEM, above v5e's 16 MiB default).
    needed_vmem = 2 * tn * per_row + 2 * num_groups * 8 * LANE * 4 + (2 << 20)
    vmem_limit = int(min(max(needed_vmem, 16 << 20), 32 << 20))

    kernel = functools.partial(_multi_nll_kernel, num_groups=num_groups,
                               ignore_index=int(ignore_index))

    bytes_in = sum(n * c * isz for c, isz in zip(class_counts, itemsizes))
    sums = pl.pallas_call(
        kernel,
        out_shape=tuple(jax.ShapeDtypeStruct((num_tiles, 1, LANE), jnp.float32)
                        for _ in range(num_groups)),
        grid=(num_tiles,),
        in_specs=[pl.BlockSpec((tn, num_groups), lambda i: (i, 0))] +
                 [pl.BlockSpec((tn, c), lambda i: (i, 0)) for c in class_counts],
        out_specs=tuple(pl.BlockSpec((1, 1, LANE), lambda i: (i, 0, 0))
                        for _ in range(num_groups)),
        compiler_params=pltpu.CompilerParams(
            dimension_semantics=("parallel",),
            vmem_limit_bytes=vmem_limit),
        cost_estimate=pl.CostEstimate(
            flops=3 * sum(n * c for c in class_counts),
            transcendentals=0,
            bytes_accessed=bytes_in + n_pad * num_groups * 4
                           + num_tiles * num_groups * LANE * 4),
    )(target_p, *inputs)

    total = jnp.float32(0.0)
    for g in range(num_groups):
        s_g = jnp.sum(sums[g][:, 0, 0])
        # Matches torch: mean over valid elements (NaN if a group has none).
        total = total + (s_g / counts[g] if reduction == "mean" else s_g)
    return total


def _reference_loss(inputs, target, ignore_index=-100, reduction="mean"):
    """Pure-JAX reference mimicking torch F.nll_loss semantics."""
    total = jnp.float32(0.0)
    for g, lp in enumerate(inputs):
        lp = lp.astype(jnp.float32)
        t = target[:, g]
        valid = t != ignore_index
        safe_t = jnp.where(valid, t, 0)
        picked = jnp.take_along_axis(lp, safe_t[:, None], axis=1)[:, 0]
        loss_sum = jnp.sum(jnp.where(valid, -picked, 0.0))
        count = jnp.sum(valid.astype(jnp.float32))
        total = total + (loss_sum / count if reduction == "mean" else loss_sum)
    return total


if __name__ == "__main__":
    key = jax.random.PRNGKey(0)
    N = 40                       # batch (exercises multi-tile + partial tail)
    class_counts = (32, 48, 64)  # per-group number of classes
    IGNORE = -100
    G = len(class_counts)

    keys = jax.random.split(key, G + 1)
    # Per-group log-probabilities kept in bf16 (native dtype streamed to VMEM).
    inputs = [
        jax.nn.log_softmax(
            jax.random.normal(keys[g], (N, class_counts[g]), dtype=jnp.float32),
            axis=-1,
        ).astype(jnp.bfloat16)
        for g in range(G)
    ]
    # Targets per group (each within its own class range), stacked to (N, G).
    target = jnp.stack(
        [jax.random.randint(jax.random.fold_in(keys[G], g), (N,), 0,
                            class_counts[g], dtype=jnp.int32)
         for g in range(G)],
        axis=1,
    )
    # Exercise ignore_index masking.
    target = target.at[0, 0].set(IGNORE)
    target = target.at[3, 2].set(IGNORE)
    target = target.at[37, 1].set(IGNORE)

    for red in ("mean", "sum"):
        out = multi_nll_loss(inputs, target, ignore_index=IGNORE, reduction=red)
        out = jax.block_until_ready(out)
        ref = jax.block_until_ready(
            _reference_loss(inputs, target, ignore_index=IGNORE, reduction=red))
        np.testing.assert_allclose(np.asarray(out), np.asarray(ref),
                                   rtol=1e-5, atol=1e-3)

    print("KERNEL_OK")
</pallas_src>

<mosaic_0001>
module attributes {stable_mosaic.version = 11 : i64} {
  func.func @_multi_nll_kernel(%arg0: i32, %arg1: memref<32x3xi32, #tpu.memory_space<vmem>>, %arg2: memref<32x32xbf16, #tpu.memory_space<vmem>>, %arg3: memref<32x48xbf16, #tpu.memory_space<vmem>>, %arg4: memref<32x64xbf16, #tpu.memory_space<vmem>>, %arg5: memref<1x1x128xf32, #tpu.memory_space<vmem>>, %arg6: memref<1x1x128xf32, #tpu.memory_space<vmem>>, %arg7: memref<1x1x128xf32, #tpu.memory_space<vmem>>) attributes {dimension_semantics = [#tpu.dimension_semantics<parallel>], iteration_bounds = array<i64: 2>, scalar_prefetch = 0 : i64, scratch_operands = 0 : i64, tpu.core_type = #tpu.core_type<tc>, window_params = [{transform_indices = @transform_0, window_bounds = array<i64: 32, 3>}, {transform_indices = @transform_1, window_bounds = array<i64: 32, 32>}, {transform_indices = @transform_2, window_bounds = array<i64: 32, 48>}, {transform_indices = @transform_3, window_bounds = array<i64: 32, 64>}, {transform_indices = @transform_4, window_bounds = array<i64: 1, 1, 128>}, {transform_indices = @transform_5, window_bounds = array<i64: 1, 1, 128>}, {transform_indices = @transform_6, window_bounds = array<i64: 1, 1, 128>}]} {
    %c0 = arith.constant 0 : index
    %c0_0 = arith.constant 0 : index
    %0 = vector.load %arg1[%c0, %c0_0] : memref<32x3xi32, #tpu.memory_space<vmem>>, vector<32x3xi32>
    %c-100_i32 = arith.constant -100 : i32
    %1 = vector.broadcast %c-100_i32 : i32 to vector<32x3xi32>
    %2 = arith.cmpi eq, %0, %1 : vector<32x3xi32>
    %c-1_i32 = arith.constant -1 : i32
    %3 = vector.broadcast %c-1_i32 : i32 to vector<32x3xi32>
    %4 = arith.select %2, %3, %0 : vector<32x3xi1>, vector<32x3xi32>
    %5 = tpu.iota {dimensions = array<i32: 1>} : vector<32x3xi32>
    %c0_1 = arith.constant 0 : index
    %c0_2 = arith.constant 0 : index
    %6 = vector.load %arg2[%c0_1, %c0_2] : memref<32x32xbf16, #tpu.memory_space<vmem>>, vector<32x32xbf16>
    %c0_i32 = arith.constant 0 : i32
    %7 = vector.broadcast %c0_i32 : i32 to vector<32x3xi32>
    %8 = arith.cmpi eq, %5, %7 : vector<32x3xi32>
    %c0_i32_3 = arith.constant 0 : i32
    %9 = vector.broadcast %c0_i32_3 : i32 to vector<32x3xi32>
    %10 = arith.select %8, %4, %9 : vector<32x3xi1>, vector<32x3xi32>
    %cst = arith.constant dense<0> : vector<32xi32>
    %11 = vector.multi_reduction <add>, %10, %cst [1] : vector<32x3xi32> to vector<32xi32>
    %12 = vector.shape_cast %11 : vector<32xi32> to vector<32x1xi32>
    %13 = tpu.iota {dimensions = array<i32: 1>} : vector<32x32xi32>
    %14 = vector.broadcast %12 : vector<32x1xi32> to vector<32x32xi32>
    %15 = arith.cmpi eq, %13, %14 : vector<32x32xi32>
    %cst_4 = arith.constant 0.000000e+00 : bf16
    %16 = vector.broadcast %cst_4 : bf16 to vector<32x32xbf16>
    %17 = arith.select %15, %6, %16 : vector<32x32xi1>, vector<32x32xbf16>
    %18 = arith.extf %17 : vector<32x32xbf16> to vector<32x32xf32>
    %19 = vector.shape_cast %18 : vector<32x32xf32> to vector<1x32x32xf32>
    %cst_5 = arith.constant dense<0.000000e+00> : vector<1xf32>
    %20 = vector.multi_reduction <add>, %19, %cst_5 [1, 2] : vector<1x32x32xf32> to vector<1xf32>
    %21 = vector.shape_cast %20 : vector<1xf32> to vector<1x1x1xf32>
    %22 = vector.extract %21[0, 0, 0] : f32 from vector<1x1x1xf32>
    %23 = vector.broadcast %22 : f32 to vector<1x1xf32>
    %cst_6 = arith.constant 0.000000e+00 : f32
    %24 = vector.broadcast %cst_6 : f32 to vector<1x1xf32>
    %25 = arith.subf %24, %23 : vector<1x1xf32>
    %26 = vector.shape_cast %25 : vector<1x1xf32> to vector<1x1xf32>
    %27 = vector.broadcast %26 : vector<1x1xf32> to vector<1x128xf32>
    %c0_7 = arith.constant 0 : index
    %c0_8 = arith.constant 0 : index
    %c0_9 = arith.constant 0 : index
    %28 = vector.load %arg5[%c0_7, %c0_8, %c0_9] : memref<1x1x128xf32, #tpu.memory_space<vmem>>, vector<1x1x128xf32>
    %29 = vector.shape_cast %28 : vector<1x1x128xf32> to vector<1x128xf32>
    %30 = vector.shape_cast %27 : vector<1x128xf32> to vector<1x1x128xf32>
    tpu.vector_store %arg5[%c0_7, %c0_8, %c0_9], %30 {strides = array<i32>} : memref<1x1x128xf32, #tpu.memory_space<vmem>>, vector<1x1x128xf32>,
    %c0_10 = arith.constant 0 : index
    %c0_11 = arith.constant 0 : index
    %31 = vector.load %arg3[%c0_10, %c0_11] : memref<32x48xbf16, #tpu.memory_space<vmem>>, vector<32x48xbf16>
    %c1_i32 = arith.constant 1 : i32
    %32 = vector.broadcast %c1_i32 : i32 to vector<32x3xi32>
    %33 = arith.cmpi eq, %5, %32 : vector<32x3xi32>
    %c0_i32_12 = arith.constant 0 : i32
    %34 = vector.broadcast %c0_i32_12 : i32 to vector<32x3xi32>
    %35 = arith.select %33, %4, %34 : vector<32x3xi1>, vector<32x3xi32>
    %cst_13 = arith.constant dense<0> : vector<32xi32>
    %36 = vector.multi_reduction <add>, %35, %cst_13 [1] : vector<32x3xi32> to vector<32xi32>
    %37 = vector.shape_cast %36 : vector<32xi32> to vector<32x1xi32>
    %38 = tpu.iota {dimensions = array<i32: 1>} : vector<32x48xi32>
    %39 = vector.broadcast %37 : vector<32x1xi32> to vector<32x48xi32>
    %40 = arith.cmpi eq, %38, %39 : vector<32x48xi32>
    %cst_14 = arith.constant 0.000000e+00 : bf16
    %41 = vector.broadcast %cst_14 : bf16 to vector<32x48xbf16>
    %42 = arith.select %40, %31, %41 : vector<32x48xi1>, vector<32x48xbf16>
    %43 = arith.extf %42 : vector<32x48xbf16> to vector<32x48xf32>
    %44 = vector.shape_cast %43 : vector<32x48xf32> to vector<1x32x48xf32>
    %cst_15 = arith.constant dense<0.000000e+00> : vector<1xf32>
    %45 = vector.multi_reduction <add>, %44, %cst_15 [1, 2] : vector<1x32x48xf32> to vector<1xf32>
    %46 = vector.shape_cast %45 : vector<1xf32> to vector<1x1x1xf32>
    %47 = vector.extract %46[0, 0, 0] : f32 from vector<1x1x1xf32>
    %48 = vector.broadcast %47 : f32 to vector<1x1xf32>
    %cst_16 = arith.constant 0.000000e+00 : f32
    %49 = vector.broadcast %cst_16 : f32 to vector<1x1xf32>
    %50 = arith.subf %49, %48 : vector<1x1xf32>
    %51 = vector.shape_cast %50 : vector<1x1xf32> to vector<1x1xf32>
    %52 = vector.broadcast %51 : vector<1x1xf32> to vector<1x128xf32>
    %c0_17 = arith.constant 0 : index
    %c0_18 = arith.constant 0 : index
    %c0_19 = arith.constant 0 : index
    %53 = vector.load %arg6[%c0_17, %c0_18, %c0_19] : memref<1x1x128xf32, #tpu.memory_space<vmem>>, vector<1x1x128xf32>
    %54 = vector.shape_cast %53 : vector<1x1x128xf32> to vector<1x128xf32>
    %55 = vector.shape_cast %52 : vector<1x128xf32> to vector<1x1x128xf32>
    tpu.vector_store %arg6[%c0_17, %c0_18, %c0_19], %55 {strides = array<i32>} : memref<1x1x128xf32, #tpu.memory_space<vmem>>, vector<1x1x128xf32>,
    %c0_20 = arith.constant 0 : index
    %c0_21 = arith.constant 0 : index
    %56 = vector.load %arg4[%c0_20, %c0_21] : memref<32x64xbf16, #tpu.memory_space<vmem>>, vector<32x64xbf16>
    %c2_i32 = arith.constant 2 : i32
    %57 = vector.broadcast %c2_i32 : i32 to vector<32x3xi32>
    %58 = arith.cmpi eq, %5, %57 : vector<32x3xi32>
    %c0_i32_22 = arith.constant 0 : i32
    %59 = vector.broadcast %c0_i32_22 : i32 to vector<32x3xi32>
    %60 = arith.select %58, %4, %59 : vector<32x3xi1>, vector<32x3xi32>
    %cst_23 = arith.constant dense<0> : vector<32xi32>
    %61 = vector.multi_reduction <add>, %60, %cst_23 [1] : vector<32x3xi32> to vector<32xi32>
    %62 = vector.shape_cast %61 : vector<32xi32> to vector<32x1xi32>
    %63 = tpu.iota {dimensions = array<i32: 1>} : vector<32x64xi32>
    %64 = vector.broadcast %62 : vector<32x1xi32> to vector<32x64xi32>
    %65 = arith.cmpi eq, %63, %64 : vector<32x64xi32>
    %cst_24 = arith.constant 0.000000e+00 : bf16
    %66 = vector.broadcast %cst_24 : bf16 to vector<32x64xbf16>
    %67 = arith.select %65, %56, %66 : vector<32x64xi1>, vector<32x64xbf16>
    %68 = arith.extf %67 : vector<32x64xbf16> to vector<32x64xf32>
    %69 = vector.shape_cast %68 : vector<32x64xf32> to vector<1x32x64xf32>
    %cst_25 = arith.constant dense<0.000000e+00> : vector<1xf32>
    %70 = vector.multi_reduction <add>, %69, %cst_25 [1, 2] : vector<1x32x64xf32> to vector<1xf32>
    %71 = vector.shape_cast %70 : vector<1xf32> to vector<1x1x1xf32>
    %72 = vector.extract %71[0, 0, 0] : f32 from vector<1x1x1xf32>
    %73 = vector.broadcast %72 : f32 to vector<1x1xf32>
    %cst_26 = arith.constant 0.000000e+00 : f32
    %74 = vector.broadcast %cst_26 : f32 to vector<1x1xf32>
    %75 = arith.subf %74, %73 : vector<1x1xf32>
    %76 = vector.shape_cast %75 : vector<1x1xf32> to vector<1x1xf32>
    %77 = vector.broadcast %76 : vector<1x1xf32> to vector<1x128xf32>
    %c0_27 = arith.constant 0 : index
    %c0_28 = arith.constant 0 : index
    %c0_29 = arith.constant 0 : index
    %78 = vector.load %arg7[%c0_27, %c0_28, %c0_29] : memref<1x1x128xf32, #tpu.memory_space<vmem>>, vector<1x1x128xf32>
    %79 = vector.shape_cast %78 : vector<1x1x128xf32> to vector<1x128xf32>
    %80 = vector.shape_cast %77 : vector<1x128xf32> to vector<1x1x128xf32>
    tpu.vector_store %arg7[%c0_27, %c0_28, %c0_29], %80 {strides = array<i32>} : memref<1x1x128xf32, #tpu.memory_space<vmem>>, vector<1x1x128xf32>,
    return
  }
  func.func @transform_0(%arg0: i32) -> (i32, i32) {
    %c0_i32 = arith.constant 0 : i32
    %c0_i32_0 = arith.constant 0 : i32
    return %arg0, %c0_i32 : i32, i32
  }
  func.func @transform_1(%arg0: i32) -> (i32, i32) {
    %c0_i32 = arith.constant 0 : i32
    %c0_i32_0 = arith.constant 0 : i32
    return %arg0, %c0_i32 : i32, i32
  }
  func.func @transform_2(%arg0: i32) -> (i32, i32) {
    %c0_i32 = arith.constant 0 : i32
    %c0_i32_0 = arith.constant 0 : i32
    return %arg0, %c0_i32 : i32, i32
  }
  func.func @transform_3(%arg0: i32) -> (i32, i32) {
    %c0_i32 = arith.constant 0 : i32
    %c0_i32_0 = arith.constant 0 : i32
    return %arg0, %c0_i32 : i32, i32
  }
  func.func @transform_4(%arg0: i32) -> (i32, i32, i32) {
    %c0_i32 = arith.constant 0 : i32
    %c0_i32_0 = arith.constant 0 : i32
    %c0_i32_1 = arith.constant 0 : i32
    return %arg0, %c0_i32, %c0_i32_0 : i32, i32, i32
  }
  func.func @transform_5(%arg0: i32) -> (i32, i32, i32) {
    %c0_i32 = arith.constant 0 : i32
    %c0_i32_0 = arith.constant 0 : i32
    %c0_i32_1 = arith.constant 0 : i32
    return %arg0, %c0_i32, %c0_i32_0 : i32, i32, i32
  }
  func.func @transform_6(%arg0: i32) -> (i32, i32, i32) {
    %c0_i32 = arith.constant 0 : i32
    %c0_i32_0 = arith.constant 0 : i32
    %c0_i32_1 = arith.constant 0 : i32
    return %arg0, %c0_i32, %c0_i32_0 : i32, i32, i32
  }
}

</mosaic_0001>

<llo_original>
// kernel: tpu_custom_call.1
$region0: #{tpu_custom_call.1}
  #allocation0 [shape = 'u32[]', space=smem, size = 0x4, offset = 0x4, fixed_abs, tag = 'smem constant byte address 0x4 - core index']
  #allocation1 [shape = 'u32[72,128]{1,0:T(1,128)}', space=vmem, size = 0x9000, scoped, tag = 'internal scratch']
  %s0 = inlined_call_operand.vmem [shape: s32[64,3], index: 0, kind: input, shape index: {}]
  %s1 = inlined_call_operand.vmem [shape: bf16[40,32], index: 1, kind: input, shape index: {}]
  %s2 = inlined_call_operand.vmem [shape: bf16[40,48], index: 2, kind: input, shape index: {}]
  %s3 = inlined_call_operand.vmem [shape: bf16[40,64], index: 3, kind: input, shape index: {}]
  %s4 = inlined_call_operand.hbm [shape: f32[2,1,128], index: 4, kind: output, shape index: {0}]
  %s5 = inlined_call_operand.hbm [shape: f32[2,1,128], index: 5, kind: output, shape index: {1}]
  %s6 = inlined_call_operand.hbm [shape: f32[2,1,128], index: 6, kind: output, shape index: {2}]
  %7 = xla_tuple %s4, %s5, %s6
  %s8 = sld [smem:[#allocation0]]
  $region65: #{tpu_custom_call.1} parent=0
    _
  %s10 = ssub.s32 1, %s8
  %s11 = scalar_select 0, %s10, %s8
  $region1: #{tpu_custom_call.1} parent=0
    #allocation2 [shape = 'u8[1024]{0}', space=vmem, size = 0x400, scoped, tag = 'output window, operand 0']
    #allocation3 [shape = 's32[2]{0}', space=sflag, size = 0x8, scoped, tag = 'scoped memory for tpu_custom_call.1']
    #allocation4 [shape = 'u8[1024]{0}', space=vmem, size = 0x400, scoped, tag = 'output window, operand 1']
    #allocation5 [shape = 's32[2]{0}', space=sflag, size = 0x8, scoped, tag = 'scoped memory for tpu_custom_call.1']
    #allocation6 [shape = 'u8[1024]{0}', space=vmem, size = 0x400, scoped, tag = 'output window, operand 2']
    %12 = vsyncpa [#allocation3], 0
    %s13 = scalar_lea.sflag [#allocation3], 1
    %14 = vsyncpa %s13, 0
    %15 = vsyncpa [#allocation5], 0
    %s16 = scalar_lea.sflag [#allocation5], 1
    %17 = vsyncpa %s16, 0
    loop: start=0, step=1, limit=4
    $region2: #{tpu_custom_call.1} parent=1 // loop_pre_header
      _
    $region3: #{tpu_custom_call.1} parent=1 // loop_header
      %s19 = sphi 0, %s23
      %p20 = scmp.ge.s32.totalorder %s19, 4
      %s29 = sphi 0, %s31
      %s32 = sphi 0, %s29
      %s33 = sphi 0, %s32
      %s49 = sphi 0, %s33
      %s55 = sphi 0, %s57
      %s58 = sphi 0, %s55
      %s59 = sphi 0, %s58
      %s75 = sphi 0, %s59
      %s81 = sphi 0, %s83
      %s84 = sphi 0, %s81
      %s85 = sphi 0, %s84
      %s101 = sphi 0, %s85
      %s107 = sphi 0, %s109
      %s110 = sphi 0, %s107
      %s111 = sphi 0, %s110
      %s127 = sphi 0, %s111
      %s133 = sphi 0, %s135
      %s136 = sphi 0, %s133
      %s137 = sphi 0, %s136
      %s153 = sphi 0, %s137
      %s159 = sphi 0, %s161
      %s162 = sphi 0, %s159
      %s163 = sphi 0, %s162
      %s179 = sphi 0, %s163
      %s185 = sphi 0, %s187
      %s188 = sphi 0, %s185
      %s189 = sphi 0, %s188
      %s205 = sphi 0, %s189
    $region4: #{tpu_custom_call.1} parent=1 // loop_header_branch
      %22 = sbr.rel (%p20) target = $region8
    $region5: #{tpu_custom_call.1} parent=1 // loop_body
      %s24 = ssub.s32 %s19, 1
      %s25 = ssub.s32 %s19, 2
      %s26 = sadd.s32 %s19, 1
      %s27 = ssub.s32 %s19, %s26
      %p28 = scmp.eq.s32.totalorder %s27, 0
      %s30 = sadd.s32 %s29, 1
      %s31 = scalar_select %p28, %s29, %s30
      %p34 = pneg %p28
      %p35 = scmp.eq.s32.totalorder %s19, 1
      %p36 = por %p34, %p35
      %p37 = scmp.ne.s32.totalorder %s29, %s32
      %p38 = scmp.eq.s32.totalorder %s19, 0
      %p39 = por %p37, %p38
      %p40 = scmp.ne.s32.totalorder %s29, %s32
      %p41 = scmp.eq.s32.totalorder %s24, 1
      %p42 = por %p40, %p41
      %p43 = scmp.ne.s32.totalorder %s32, %s33
      %p44 = scmp.eq.s32.totalorder %s24, 0
      %p45 = por %p43, %p44
      %p46 = scmp.ne.s32.totalorder %s32, %s33
      %p47 = scmp.eq.s32.totalorder %s25, 1
      %p48 = por %p46, %p47
      %p50 = scmp.ne.s32.totalorder %s33, %s49
      %p51 = scmp.eq.s32.totalorder %s25, 0
      %p52 = por %p50, %p51
      %s53 = ssub.s32 %s19, %s26
      %p54 = scmp.eq.s32.totalorder %s53, 0
      %s56 = sadd.s32 %s55, 1
      %s57 = scalar_select %p54, %s55, %s56
      %p60 = pneg %p54
      %p61 = scmp.eq.s32.totalorder %s19, 1
      %p62 = por %p60, %p61
      %p63 = scmp.ne.s32.totalorder %s55, %s58
      %p64 = scmp.eq.s32.totalorder %s19, 0
      %p65 = por %p63, %p64
      %p66 = scmp.ne.s32.totalorder %s55, %s58
      %p67 = scmp.eq.s32.totalorder %s24, 1
      %p68 = por %p66, %p67
      %p69 = scmp.ne.s32.totalorder %s58, %s59
      %p70 = scmp.eq.s32.totalorder %s24, 0
      %p71 = por %p69, %p70
      %p72 = scmp.ne.s32.totalorder %s58, %s59
      %p73 = scmp.eq.s32.totalorder %s25, 1
      %p74 = por %p72, %p73
      %p76 = scmp.ne.s32.totalorder %s59, %s75
      %p77 = scmp.eq.s32.totalorder %s25, 0
      %p78 = por %p76, %p77
      %s79 = ssub.s32 %s19, %s26
      %p80 = scmp.eq.s32.totalorder %s79, 0
      %s82 = sadd.s32 %s81, 1
      %s83 = scalar_select %p80, %s81, %s82
      %p86 = pneg %p80
      %p87 = scmp.eq.s32.totalorder %s19, 1
      %p88 = por %p86, %p87
      %p89 = scmp.ne.s32.totalorder %s81, %s84
      %p90 = scmp.eq.s32.totalorder %s19, 0
      %p91 = por %p89, %p90
      %p92 = scmp.ne.s32.totalorder %s81, %s84
      %p93 = scmp.eq.s32.totalorder %s24, 1
      %p94 = por %p92, %p93
      %p95 = scmp.ne.s32.totalorder %s84, %s85
      %p96 = scmp.eq.s32.totalorder %s24, 0
      %p97 = por %p95, %p96
      %p98 = scmp.ne.s32.totalorder %s84, %s85
      %p99 = scmp.eq.s32.totalorder %s25, 1
      %p100 = por %p98, %p99
      %p102 = scmp.ne.s32.totalorder %s85, %s101
      %p103 = scmp.eq.s32.totalorder %s25, 0
      %p104 = por %p102, %p103
      %s105 = ssub.s32 %s19, %s26
      %p106 = scmp.eq.s32.totalorder %s105, 0
      %s108 = sadd.s32 %s107, 1
      %s109 = scalar_select %p106, %s107, %s108
      %p112 = pneg %p106
      %p113 = scmp.eq.s32.totalorder %s19, 1
      %p114 = por %p112, %p113
      %p115 = scmp.ne.s32.totalorder %s107, %s110
      %p116 = scmp.eq.s32.totalorder %s19, 0
      %p117 = por %p115, %p116
      %p118 = scmp.ne.s32.totalorder %s107, %s110
      %p119 = scmp.eq.s32.totalorder %s24, 1
      %p120 = por %p118, %p119
      %p121 = scmp.ne.s32.totalorder %s110, %s111
      %p122 = scmp.eq.s32.totalorder %s24, 0
      %p123 = por %p121, %p122
      %p124 = scmp.ne.s32.totalorder %s110, %s111
      %p125 = scmp.eq.s32.totalorder %s25, 1
      %p126 = por %p124, %p125
      %p128 = scmp.ne.s32.totalorder %s111, %s127
      %p129 = scmp.eq.s32.totalorder %s25, 0
      %p130 = por %p128, %p129
      %s131 = ssub.s32 %s19, %s26
      %p132 = scmp.eq.s32.totalorder %s131, 0
      %s134 = sadd.s32 %s133, 1
      %s135 = scalar_select %p132, %s133, %s134
      %p138 = pneg %p132
      %p139 = scmp.eq.s32.totalorder %s19, 1
      %p140 = por %p138, %p139
      %p141 = scmp.ne.s32.totalorder %s133, %s136
      %p142 = scmp.eq.s32.totalorder %s19, 0
      %p143 = por %p141, %p142
      %p144 = scmp.ne.s32.totalorder %s133, %s136
      %p145 = scmp.eq.s32.totalorder %s24, 1
      %p146 = por %p144, %p145
      %p147 = scmp.ne.s32.totalorder %s136, %s137
      %p148 = scmp.eq.s32.totalorder %s24, 0
      %p149 = por %p147, %p148
      %p150 = scmp.ne.s32.totalorder %s136, %s137
      %p151 = scmp.eq.s32.totalorder %s25, 1
      %p152 = por %p150, %p151
      %p154 = scmp.ne.s32.totalorder %s137, %s153
      %p155 = scmp.eq.s32.totalorder %s25, 0
      %p156 = por %p154, %p155
      %s157 = ssub.s32 %s19, %s26
      %p158 = scmp.eq.s32.totalorder %s157, 0
      %s160 = sadd.s32 %s159, 1
      %s161 = scalar_select %p158, %s159, %s160
      %p164 = pneg %p158
      %p165 = scmp.eq.s32.totalorder %s19, 1
      %p166 = por %p164, %p165
      %p167 = scmp.ne.s32.totalorder %s159, %s162
      %p168 = scmp.eq.s32.totalorder %s19, 0
      %p169 = por %p167, %p168
      %p170 = scmp.ne.s32.totalorder %s159, %s162
      %p171 = scmp.eq.s32.totalorder %s24, 1
      %p172 = por %p170, %p171
      %p173 = scmp.ne.s32.totalorder %s162, %s163
      %p174 = scmp.eq.s32.totalorder %s24, 0
      %p175 = por %p173, %p174
      %p176 = scmp.ne.s32.totalorder %s162, %s163
      %p177 = scmp.eq.s32.totalorder %s25, 1
      %p178 = por %p176, %p177
      %p180 = scmp.ne.s32.totalorder %s163, %s179
      %p181 = scmp.eq.s32.totalorder %s25, 0
      %p182 = por %p180, %p181
      %s183 = ssub.s32 %s19, %s26
      %p184 = scmp.eq.s32.totalorder %s183, 0
      %s186 = sadd.s32 %s185, 1
      %s187 = scalar_select %p184, %s185, %s186
      %p190 = pneg %p184
      %p191 = scmp.eq.s32.totalorder %s19, 1
      %p192 = por %p190, %p191
      %p193 = scmp.ne.s32.totalorder %s185, %s188
      %p194 = scmp.eq.s32.totalorder %s19, 0
      %p195 = por %p193, %p194
      %p196 = scmp.ne.s32.totalorder %s185, %s188
      %p197 = scmp.eq.s32.totalorder %s24, 1
      %p198 = por %p196, %p197
      %p199 = scmp.ne.s32.totalorder %s188, %s189
      %p200 = scmp.eq.s32.totalorder %s24, 0
      %p201 = por %p199, %p200
      %p202 = scmp.ne.s32.totalorder %s188, %s189
      %p203 = scmp.eq.s32.totalorder %s25, 1
      %p204 = por %p202, %p203
      %p206 = scmp.ne.s32.totalorder %s189, %s205
      %p207 = scmp.eq.s32.totalorder %s25, 0
      %p208 = por %p206, %p207
      %p209 = scmp.le.s32.totalorder 1, %s19
      %p210 = scmp.lt.s32.totalorder %s19, 3
      %p211 = pnand %p209, %p210
      %p212 = pneg %p211
      // Predicated region
      $region9: #{tpu_custom_call.1} parent=5 // pred_check
        _
      $region10: #{tpu_custom_call.1} parent=5 // pred_check_branch
        %214 = sbr.rel (%p211) target = $region12
      $region11: #{tpu_custom_call.1} parent=5 // pred_region
        %s215 = ssub.s32 %s19, 1
      $region12: #{tpu_custom_call.1} parent=5 // pred_fallthru
        _
      %p216 = scmp.lt.s32.totalorder %s19, 2
      // Predicated region
      $region13: #{tpu_custom_call.1} parent=5 // pred_check
        %p217 = pneg %p216
      $region14: #{tpu_custom_call.1} parent=5 // pred_check_branch
        %219 = sbr.rel (%p217) target = $region16
      $region15: #{tpu_custom_call.1} parent=5 // pred_region
        // Predicated region
        $region17: #{tpu_custom_call.1} parent=15 // pred_check
          %p220 = pneg %p39
        $region18: #{tpu_custom_call.1} parent=15 // pred_check_branch
          %222 = sbr.rel (%p220) target = $region20
        $region19: #{tpu_custom_call.1} parent=15 // pred_region
          %s223 = smul.u32 4, %s19
          %p224 = scmp.lt.s32.totalorder %s223, 7
          %s225 = scalar_select %p224, %s223, 7
          %s226 = smul.addr %s225, 8
          %s227 = scalar_lea.vmem %s0, %s226
          %s228 = smul.u32 4, %s19
        $region20: #{tpu_custom_call.1} parent=15 // pred_fallthru
          _
        // Predicated region
        $region21: #{tpu_custom_call.1} parent=15 // pred_check
          %p229 = pneg %p65
        $region22: #{tpu_custom_call.1} parent=15 // pred_check_branch
          %231 = sbr.rel (%p229) target = $region24
        $region23: #{tpu_custom_call.1} parent=15 // pred_region
          %s232 = smul.u32 4, %s19
          %s233 = ssub.s32 5, %s232
          %p234 = scmp.lt.s32.totalorder %s233, 4
          %s235 = scalar_select %p234, %s233, 4
          %s236 = smul.u32 4, %s235
          %p237 = scmp.lt.s32.totalorder %s232, 4
          %s238 = scalar_select %p237, %s232, 4
          %s239 = smul.addr %s238, 4
          %s240 = scalar_lea.vmem %s1, %s239
          %s241 = smul.u32 4, %s19
          %s242 = ssub.s32 5, %s241
          %p243 = scmp.lt.s32.totalorder %s242, 4
          %s244 = scalar_select %p243, %s242, 4
          %s245 = smul.u32 4, %s244
        $region24: #{tpu_custom_call.1} parent=15 // pred_fallthru
          _
        // Predicated region
        $region25: #{tpu_custom_call.1} parent=15 // pred_check
          %p246 = pneg %p91
        $region26: #{tpu_custom_call.1} parent=15 // pred_check_branch
          %248 = sbr.rel (%p246) target = $region28
        $region27: #{tpu_custom_call.1} parent=15 // pred_region
          %s249 = smul.u32 4, %s19
          %s250 = ssub.s32 5, %s249
          %p251 = scmp.lt.s32.totalorder %s250, 4
          %s252 = scalar_select %p251, %s250, 4
          %s253 = smul.u32 4, %s252
          %p254 = scmp.lt.s32.totalorder %s249, 4
          %s255 = scalar_select %p254, %s249, 4
          %s256 = smul.addr %s255, 4
          %s257 = scalar_lea.vmem %s2, %s256
          %s258 = smul.u32 4, %s19
          %s259 = ssub.s32 5, %s258
          %p260 = scmp.lt.s32.totalorder %s259, 4
          %s261 = scalar_select %p260, %s259, 4
          %s262 = smul.u32 4, %s261
        $region28: #{tpu_custom_call.1} parent=15 // pred_fallthru
          _
        // Predicated region
        $region29: #{tpu_custom_call.1} parent=15 // pred_check
          %p263 = pneg %p117
        $region30: #{tpu_custom_call.1} parent=15 // pred_check_branch
          %265 = sbr.rel (%p263) target = $region32
        $region31: #{tpu_custom_call.1} parent=15 // pred_region
          %s266 = smul.u32 4, %s19
          %s267 = ssub.s32 5, %s266
          %p268 = scmp.lt.s32.totalorder %s267, 4
          %s269 = scalar_select %p268, %s267, 4
          %s270 = smul.u32 4, %s269
          %p271 = scmp.lt.s32.totalorder %s266, 4
          %s272 = scalar_select %p271, %s266, 4
          %s273 = smul.addr %s272, 4
          %s274 = scalar_lea.vmem %s3, %s273
          %s275 = smul.u32 4, %s19
          %s276 = ssub.s32 5, %s275
          %p277 = scmp.lt.s32.totalorder %s276, 4
          %s278 = scalar_select %p277, %s276, 4
          %s279 = smul.u32 4, %s278
        $region32: #{tpu_custom_call.1} parent=15 // pred_fallthru
          _
      $region16: #{tpu_custom_call.1} parent=5 // pred_fallthru
        _
      %p280 = scmp.le.s32.totalorder 1, %s19
      %p281 = scmp.lt.s32.totalorder %s19, 3
      %p282 = pnand %p280, %p281
      %p283 = pneg %p282
      // Predicated region
      $region33: #{tpu_custom_call.1} parent=5 // pred_check
        _
      $region34: #{tpu_custom_call.1} parent=5 // pred_check_branch
        %285 = sbr.rel (%p282) target = $region36
      $region35: #{tpu_custom_call.1} parent=5 // pred_region
        %s286 = ssub.s32 %s19, 1
        %s287 = smul.u32 4, %s24
        %p288 = scmp.lt.s32.totalorder %s287, 7
        %s289 = scalar_select %p288, %s287, 7
        %s290 = smul.addr %s289, 8
        %s291 = scalar_lea.vmem %s0, %s290
        %p292 = pneg %p45
        %p293 = pneg %p42
        %s294 = smul.u32 4, %s24
        %s295 = ssub.s32 5, %s294
        %p296 = scmp.lt.s32.totalorder %s295, 4
        %s297 = scalar_select %p296, %s295, 4
        %s298 = smul.u32 4, %s297
        %p299 = scmp.lt.s32.totalorder %s294, 4
        %s300 = scalar_select %p299, %s294, 4
        %s301 = smul.addr %s300, 4
        %s302 = scalar_lea.vmem %s1, %s301
        %p303 = pneg %p71
        %p304 = pneg %p68
        %s305 = smul.u32 4, %s24
        %s306 = ssub.s32 5, %s305
        %p307 = scmp.lt.s32.totalorder %s306, 4
        %s308 = scalar_select %p307, %s306, 4
        %s309 = smul.u32 4, %s308
        %p310 = scmp.lt.s32.totalorder %s305, 4
        %s311 = scalar_select %p310, %s305, 4
        %s312 = smul.addr %s311, 4
        %s313 = scalar_lea.vmem %s2, %s312
        %p314 = pneg %p97
        %p315 = pneg %p94
        %s316 = smul.u32 4, %s24
        %s317 = ssub.s32 5, %s316
        %p318 = scmp.lt.s32.totalorder %s317, 4
        %s319 = scalar_select %p318, %s317, 4
        %s320 = smul.u32 4, %s319
        %p321 = scmp.lt.s32.totalorder %s316, 4
        %s322 = scalar_select %p321, %s316, 4
        %s323 = smul.addr %s322, 4
        %s324 = scalar_lea.vmem %s3, %s323
        %p325 = pneg %p123
        %p326 = pneg %p120
        %p327 = pneg %p149
        %p328 = pneg %p146
        %s329 = sand.u32 %s136, 1
        %s330 = scalar_lea.sflag [#allocation3], %s329
        %s331 = sand.u32 %s136, 1
        %s332 = scalar_lea.vmem [#allocation2], %s331
        %p333 = pneg %p175
        %p334 = pneg %p172
        %s335 = sand.u32 %s24, 1
        %s336 = scalar_lea.sflag [#allocation5], %s335
        %s337 = sand.u32 %s162, 1
        %s338 = scalar_lea.vmem [#allocation4], %s337
        %p339 = pneg %p201
        %p340 = pneg %p198
        %s341 = sand.u32 %s24, 1
        %s342 = scalar_lea.sflag [#allocation5], %s341
        %s343 = sand.u32 %s188, 1
        %s344 = scalar_lea.vmem [#allocation6], %s343
        %s345 = smul.u32 4, %s24
        %p346 = scmp.lt.s32.totalorder %s345, 7
        %s347 = scalar_select %p346, %s345, 7
        %s348 = smul.addr %s347, 8
        %s349 = scalar_lea.vmem %s0, %s348
        %s350 = smul.u32 4, %s24
        %s351 = smul.u32 4, %s24
        %s352 = ssub.s32 5, %s351
        %p353 = scmp.lt.s32.totalorder %s352, 4
        %s354 = scalar_select %p353, %s352, 4
        %s355 = smul.u32 4, %s354
        %p356 = scmp.lt.s32.totalorder %s351, 4
        %s357 = scalar_select %p356, %s351, 4
        %s358 = smul.addr %s357, 4
        %s359 = scalar_lea.vmem %s1, %s358
        %s360 = smul.u32 4, %s24
        %s361 = ssub.s32 5, %s360
        %p362 = scmp.lt.s32.totalorder %s361, 4
        %s363 = scalar_select %p362, %s361, 4
        %s364 = smul.u32 4, %s363
        %s365 = smul.u32 4, %s24
        %s366 = ssub.s32 5, %s365
        %p367 = scmp.lt.s32.totalorder %s366, 4
        %s368 = scalar_select %p367, %s366, 4
        %s369 = smul.u32 4, %s368
        %p370 = scmp.lt.s32.totalorder %s365, 4
        %s371 = scalar_select %p370, %s365, 4
        %s372 = smul.addr %s371, 4
        %s373 = scalar_lea.vmem %s2, %s372
        %s374 = smul.u32 4, %s24
        %s375 = ssub.s32 5, %s374
        %p376 = scmp.lt.s32.totalorder %s375, 4
        %s377 = scalar_select %p376, %s375, 4
        %s378 = smul.u32 4, %s377
        %s379 = smul.u32 4, %s24
        %s380 = ssub.s32 5, %s379
        %p381 = scmp.lt.s32.totalorder %s380, 4
        %s382 = scalar_select %p381, %s380, 4
        %s383 = smul.u32 4, %s382
        %p384 = scmp.lt.s32.totalorder %s379, 4
        %s385 = scalar_select %p384, %s379, 4
        %s386 = smul.addr %s385, 4
        %s387 = scalar_lea.vmem %s3, %s386
        %s388 = smul.u32 4, %s24
        %s389 = ssub.s32 5, %s388
        %p390 = scmp.lt.s32.totalorder %s389, 4
        %s391 = scalar_select %p390, %s389, 4
        %s392 = smul.u32 4, %s391
        %v394 = vld [vmem:[%s349] sm:$0xff]
        %v395 = vld [vmem:[%s349 + $0x8] sm:$0xff]
        %v396 = vld [vmem:[%s349 + $0x10] sm:$0xff]
        %v397 = vld [vmem:[%s349 + $0x18] sm:$0xff]
        %vm398 = vcmp.eq.s32.totalorder %v394, 4294967196
        %vm399 = vcmp.eq.s32.totalorder %v395, 4294967196
        %vm400 = vcmp.eq.s32.totalorder %v396, 4294967196
        %vm401 = vcmp.eq.s32.totalorder %v397, 4294967196
        %v402 = vsel %vm398, 4294967295, %v394
        %v403 = vsel %vm399, 4294967295, %v395
        %v404 = vsel %vm400, 4294967295, %v396
        %v405 = vsel %vm401, 4294967295, %v397
        %v406 = vlaneseq
        %v407 = vand.u32 %v406, 127
        %v408 = vld [vmem:[%s359] sm:$0xf]
        %v409 = vld [vmem:[%s359 + $0x4] sm:$0xf]
        %v410 = vld [vmem:[%s359 + $0x8] sm:$0xf]
        %v411 = vld [vmem:[%s359 + $0xc] sm:$0xf]
        %vm412 = vcmp.eq.s32.totalorder %v407, 0
        %v413 = vsel %vm412, %v402, 0
        %v414 = vsel %vm412, %v403, 0
        %v415 = vsel %vm412, %v404, 0
        %v416 = vsel %vm412, %v405, 0
        %vm417 = vcmask 23552
        %v418 = vsel %vm417, %v413, 0
        %v419 = vand.u32 %v418, 65535
        %v420 = vshrl.u32 %v418, 16
        %v421 = vcvt.s32.f32 %v419
        %v422 = vcvt.s32.f32 %v420
        %423 = vadd.xlane.f32.xlu0 %v421
        %v424 = vpop.xlane.xlu0 %423
        %425 = vadd.xlane.f32.xlu0 %v422
        %v426 = vpop.xlane.xlu0 %425
        %v427 = vcvt.f32.s32 %v424
        %v428 = vcvt.f32.s32 %v426
        %v429 = vshll.u32 %v428, 16
        %v430 = vadd.s32 %v429, %v427
        %v431 = vsel %vm417, %v414, 0
        %v432 = vand.u32 %v431, 65535
        %v433 = vshrl.u32 %v431, 16
        %v434 = vcvt.s32.f32 %v432
        %v435 = vcvt.s32.f32 %v433
        %436 = vadd.xlane.f32.xlu0 %v434
        %v437 = vpop.xlane.xlu0 %436
        %438 = vadd.xlane.f32.xlu0 %v435
        %v439 = vpop.xlane.xlu0 %438
        %v440 = vcvt.f32.s32 %v437
        %v441 = vcvt.f32.s32 %v439
        %v442 = vshll.u32 %v441, 16
        %v443 = vadd.s32 %v442, %v440
        %v444 = vsel %vm417, %v415, 0
        %v445 = vand.u32 %v444, 65535
        %v446 = vshrl.u32 %v444, 16
        %v447 = vcvt.s32.f32 %v445
        %v448 = vcvt.s32.f32 %v446
        %449 = vadd.xlane.f32.xlu0 %v447
        %v450 = vpop.xlane.xlu0 %449
        %451 = vadd.xlane.f32.xlu0 %v448
        %v452 = vpop.xlane.xlu0 %451
        %v453 = vcvt.f32.s32 %v450
        %v454 = vcvt.f32.s32 %v452
        %v455 = vshll.u32 %v454, 16
        %v456 = vadd.s32 %v455, %v453
        %v457 = vsel %vm417, %v416, 0
        %v458 = vand.u32 %v457, 65535
        %v459 = vshrl.u32 %v457, 16
        %v460 = vcvt.s32.f32 %v458
        %v461 = vcvt.s32.f32 %v459
        %462 = vadd.xlane.f32.xlu0 %v460
        %v463 = vpop.xlane.xlu0 %462
        %464 = vadd.xlane.f32.xlu0 %v461
        %v465 = vpop.xlane.xlu0 %464
        %v466 = vcvt.f32.s32 %v463
        %v467 = vcvt.f32.s32 %v465
        %v468 = vshll.u32 %v467, 16
        %v469 = vadd.s32 %v468, %v466
        %vm470 = vcmp.eq.s32.totalorder %v407, %v430
        %vm471 = vcmp.eq.s32.totalorder %v407, %v443
        %vm472 = vcmp.eq.s32.totalorder %v407, %v456
        %vm473 = vcmp.eq.s32.totalorder %v407, %v469
        %vm474 = vmpackc.low %vm470, %vm470
        %vm475 = vmpackc.low %vm471, %vm471
        %vm476 = vmpackc.low %vm472, %vm472
        %vm477 = vmpackc.low %vm473, %vm473
        %v478 = vsel %vm474, %v408, 0
        %v479 = vsel %vm475, %v409, 0
        %v480 = vsel %vm476, %v410, 0
        %v481 = vsel %vm477, %v411, 0
        %v482 = vunpack.c.l.bf16 %v478
        %v483 = vunpack.c.l.bf16 %v479
        %v484 = vunpack.c.l.bf16 %v480
        %v485 = vunpack.c.l.bf16 %v481
        %vm486 = vcmask 261120
        %v487 = vsel %vm486, %v482, 0.0
        %v488 = vsel %vm486, %v483, 0.0
        %v489 = vadd.f32 %v487, %v488
        %v490 = vsel %vm486, %v484, 0.0
        %v491 = vadd.f32 %v489, %v490
        %v492 = vsel %vm486, %v485, 0.0
        %v493 = vadd.f32 %v491, %v492
        %494 = vadd.xlane.f32.xlu0 %v493
        %v495 = vpop.xlane.xlu0 %494
        %v496 = vrot.slane %v495, 4
        %v497 = vadd.f32 %v495, %v496
        %v498 = vrot.slane %v497, 2
        %v499 = vadd.f32 %v497, %v498
        %v500 = vrot.slane %v499, 1
        %v501 = vadd.f32 %v499, %v500
        %s502 = vtos %v501
        %v503 = vstv %s502
        %v504 = vsub.f32 0.0, %v503
        %505 = vst [vmem:[%s332] sm:$0x1] %v504
        %v506 = vld [vmem:[%s373] sm:$0xf]
        %v507 = vld [vmem:[%s373 + $0x4] sm:$0xf]
        %v508 = vld [vmem:[%s373 + $0x8] sm:$0xf]
        %v509 = vld [vmem:[%s373 + $0xc] sm:$0xf]
        %vm510 = vcmp.eq.s32.totalorder %v407, 1
        %v511 = vsel %vm510, %v402, 0
        %v512 = vsel %vm510, %v403, 0
        %v513 = vsel %vm510, %v404, 0
        %v514 = vsel %vm510, %v405, 0
        %v515 = vsel %vm417, %v511, 0
        %v516 = vand.u32 %v515, 65535
        %v517 = vshrl.u32 %v515, 16
        %v518 = vcvt.s32.f32 %v516
        %v519 = vcvt.s32.f32 %v517
        %520 = vadd.xlane.f32.xlu0 %v518
        %v521 = vpop.xlane.xlu0 %520
        %522 = vadd.xlane.f32.xlu0 %v519
        %v523 = vpop.xlane.xlu0 %522
        %v524 = vcvt.f32.s32 %v521
        %v525 = vcvt.f32.s32 %v523
        %v526 = vshll.u32 %v525, 16
        %v527 = vadd.s32 %v526, %v524
        %v528 = vsel %vm417, %v512, 0
        %v529 = vand.u32 %v528, 65535
        %v530 = vshrl.u32 %v528, 16
        %v531 = vcvt.s32.f32 %v529
        %v532 = vcvt.s32.f32 %v530
        %533 = vadd.xlane.f32.xlu0 %v531
        %v534 = vpop.xlane.xlu0 %533
        %535 = vadd.xlane.f32.xlu0 %v532
        %v536 = vpop.xlane.xlu0 %535
        %v537 = vcvt.f32.s32 %v534
        %v538 = vcvt.f32.s32 %v536
        %v539 = vshll.u32 %v538, 16
        %v540 = vadd.s32 %v539, %v537
        %v541 = vsel %vm417, %v513, 0
        %v542 = vand.u32 %v541, 65535
        %v543 = vshrl.u32 %v541, 16
        %v544 = vcvt.s32.f32 %v542
        %v545 = vcvt.s32.f32 %v543
        %546 = vadd.xlane.f32.xlu0 %v544
        %v547 = vpop.xlane.xlu0 %546
        %548 = vadd.xlane.f32.xlu0 %v545
        %v549 = vpop.xlane.xlu0 %548
        %v550 = vcvt.f32.s32 %v547
        %v551 = vcvt.f32.s32 %v549
        %v552 = vshll.u32 %v551, 16
        %v553 = vadd.s32 %v552, %v550
        %v554 = vsel %vm417, %v514, 0
        %v555 = vand.u32 %v554, 65535
        %v556 = vshrl.u32 %v554, 16
        %v557 = vcvt.s32.f32 %v555
        %v558 = vcvt.s32.f32 %v556
        %559 = vadd.xlane.f32.xlu0 %v557
        %v560 = vpop.xlane.xlu0 %559
        %561 = vadd.xlane.f32.xlu0 %v558
        %v562 = vpop.xlane.xlu0 %561
        %v563 = vcvt.f32.s32 %v560
        %v564 = vcvt.f32.s32 %v562
        %v565 = vshll.u32 %v564, 16
        %v566 = vadd.s32 %v565, %v563
        %vm567 = vcmp.eq.s32.totalorder %v407, %v527
        %vm568 = vcmp.eq.s32.totalorder %v407, %v540
        %vm569 = vcmp.eq.s32.totalorder %v407, %v553
        %vm570 = vcmp.eq.s32.totalorder %v407, %v566
        %vm571 = vmpackc.low %vm567, %vm567
        %vm572 = vmpackc.low %vm568, %vm568
        %vm573 = vmpackc.low %vm569, %vm569
        %vm574 = vmpackc.low %vm570, %vm570
        %v575 = vsel %vm571, %v506, 0
        %v576 = vsel %vm572, %v507, 0
        %v577 = vsel %vm573, %v508, 0
        %v578 = vsel %vm574, %v509, 0
        %v579 = vunpack.c.l.bf16 %v575
        %v580 = vunpack.c.l.bf16 %v576
        %v581 = vunpack.c.l.bf16 %v577
        %v582 = vunpack.c.l.bf16 %v578
        %vm583 = vcmask 392192
        %v584 = vsel %vm583, %v579, 0.0
        %v585 = vsel %vm583, %v580, 0.0
        %v586 = vadd.f32 %v584, %v585
        %v587 = vsel %vm583, %v581, 0.0
        %v588 = vadd.f32 %v586, %v587
        %v589 = vsel %vm583, %v582, 0.0
        %v590 = vadd.f32 %v588, %v589
        %591 = vadd.xlane.f32.xlu0 %v590
        %v592 = vpop.xlane.xlu0 %591
        %v593 = vrot.slane %v592, 4
        %v594 = vadd.f32 %v592, %v593
        %v595 = vrot.slane %v594, 2
        %v596 = vadd.f32 %v594, %v595
        %v597 = vrot.slane %v596, 1
        %v598 = vadd.f32 %v596, %v597
        %s599 = vtos %v598
        %v600 = vstv %s599
        %v601 = vsub.f32 0.0, %v600
        %602 = vst [vmem:[%s338] sm:$0x1] %v601
        %v603 = vld [vmem:[%s387] sm:$0xf]
        %v604 = vld [vmem:[%s387 + $0x4] sm:$0xf]
        %v605 = vld [vmem:[%s387 + $0x8] sm:$0xf]
        %v606 = vld [vmem:[%s387 + $0xc] sm:$0xf]
        %vm607 = vcmp.eq.s32.totalorder %v407, 2
        %v608 = vsel %vm607, %v402, 0
        %v609 = vsel %vm607, %v403, 0
        %v610 = vsel %vm607, %v404, 0
        %v611 = vsel %vm607, %v405, 0
        %v612 = vsel %vm417, %v608, 0
        %v613 = vand.u32 %v612, 65535
        %v614 = vshrl.u32 %v612, 16
        %v615 = vcvt.s32.f32 %v613
        %v616 = vcvt.s32.f32 %v614
        %617 = vadd.xlane.f32.xlu0 %v615
        %v618 = vpop.xlane.xlu0 %617
        %619 = vadd.xlane.f32.xlu0 %v616
        %v620 = vpop.xlane.xlu0 %619
        %v621 = vcvt.f32.s32 %v618
        %v622 = vcvt.f32.s32 %v620
        %v623 = vshll.u32 %v622, 16
        %v624 = vadd.s32 %v623, %v621
        %v625 = vsel %vm417, %v609, 0
        %v626 = vand.u32 %v625, 65535
        %v627 = vshrl.u32 %v625, 16
        %v628 = vcvt.s32.f32 %v626
        %v629 = vcvt.s32.f32 %v627
        %630 = vadd.xlane.f32.xlu0 %v628
        %v631 = vpop.xlane.xlu0 %630
        %632 = vadd.xlane.f32.xlu0 %v629
        %v633 = vpop.xlane.xlu0 %632
        %v634 = vcvt.f32.s32 %v631
        %v635 = vcvt.f32.s32 %v633
        %v636 = vshll.u32 %v635, 16
        %v637 = vadd.s32 %v636, %v634
        %v638 = vsel %vm417, %v610, 0
        %v639 = vand.u32 %v638, 65535
        %v640 = vshrl.u32 %v638, 16
        %v641 = vcvt.s32.f32 %v639
        %v642 = vcvt.s32.f32 %v640
        %643 = vadd.xlane.f32.xlu0 %v641
        %v644 = vpop.xlane.xlu0 %643
        %645 = vadd.xlane.f32.xlu0 %v642
        %v646 = vpop.xlane.xlu0 %645
        %v647 = vcvt.f32.s32 %v644
        %v648 = vcvt.f32.s32 %v646
        %v649 = vshll.u32 %v648, 16
        %v650 = vadd.s32 %v649, %v647
        %v651 = vsel %vm417, %v611, 0
        %v652 = vand.u32 %v651, 65535
        %v653 = vshrl.u32 %v651, 16
        %v654 = vcvt.s32.f32 %v652
        %v655 = vcvt.s32.f32 %v653
        %656 = vadd.xlane.f32.xlu0 %v654
        %v657 = vpop.xlane.xlu0 %656
        %658 = vadd.xlane.f32.xlu0 %v655
        %v659 = vpop.xlane.xlu0 %658
        %v660 = vcvt.f32.s32 %v657
        %v661 = vcvt.f32.s32 %v659
        %v662 = vshll.u32 %v661, 16
        %v663 = vadd.s32 %v662, %v660
        %vm664 = vcmp.eq.s32.totalorder %v407, %v624
        %vm665 = vcmp.eq.s32.totalorder %v407, %v637
        %vm666 = vcmp.eq.s32.totalorder %v407, %v650
        %vm667 = vcmp.eq.s32.totalorder %v407, %v663
        %vm668 = vmpackc.low %vm664, %vm664
        %vm669 = vmpackc.low %vm665, %vm665
        %vm670 = vmpackc.low %vm666, %vm666
        %vm671 = vmpackc.low %vm667, %vm667
        %v672 = vsel %vm668, %v603, 0
        %v673 = vsel %vm669, %v604, 0
        %v674 = vsel %vm670, %v605, 0
        %v675 = vsel %vm671, %v606, 0
        %v676 = vunpack.c.l.bf16 %v672
        %v677 = vunpack.c.l.bf16 %v673
        %v678 = vunpack.c.l.bf16 %v674
        %v679 = vunpack.c.l.bf16 %v675
        %vm680 = vcmask 523264
        %v681 = vsel %vm680, %v676, 0.0
        %v682 = vsel %vm680, %v677, 0.0
        %v683 = vadd.f32 %v681, %v682
        %v684 = vsel %vm680, %v678, 0.0
        %v685 = vadd.f32 %v683, %v684
        %v686 = vsel %vm680, %v679, 0.0
        %v687 = vadd.f32 %v685, %v686
        %688 = vadd.xlane.f32.xlu0 %v687
        %v689 = vpop.xlane.xlu0 %688
        %v690 = vrot.slane %v689, 4
        %v691 = vadd.f32 %v689, %v690
        %v692 = vrot.slane %v691, 2
        %v693 = vadd.f32 %v691, %v692
        %v694 = vrot.slane %v693, 1
        %v695 = vadd.f32 %v693, %v694
        %s696 = vtos %v695
        %v697 = vstv %s696
        %v698 = vsub.f32 0.0, %v697
        %699 = vst [vmem:[%s344] sm:$0x1] %v698
        %s700 = sand.u32 %s136, 1
        %s701 = scalar_lea.sflag [#allocation3], %s700
        %s702 = sand.u32 %s136, 1
        %s703 = scalar_lea.vmem [#allocation2], %s702
        %s704 = sand.u32 %s24, 1
        %s705 = scalar_lea.sflag [#allocation5], %s704
        %s706 = sand.u32 %s162, 1
        %s707 = scalar_lea.vmem [#allocation4], %s706
        %s708 = sand.u32 %s24, 1
        %s709 = scalar_lea.sflag [#allocation5], %s708
        %s710 = sand.u32 %s188, 1
        %s711 = scalar_lea.vmem [#allocation6], %s710
        // Predicated region
        $region37: #{tpu_custom_call.1} parent=35 // pred_check
          %p712 = pneg %p146
        $region38: #{tpu_custom_call.1} parent=35 // pred_check_branch
          %714 = sbr.rel (%p712) target = $region40
        $region39: #{tpu_custom_call.1} parent=35 // pred_region
          %716 = vsyncadd %s701, 0
          %s717 = scalar_lea.hbm %s4, %s24
          %s719 = sshll.u32 %s703, 4
          %s720 = int_to_ptr.vmem [resolvable:$true] %s719
          %s721 = sshll.u32 %s717, 4
          %s722 = int_to_ptr.hbm [resolvable:$true] %s721
          %724 = dma.vmem_to_hbm [thread:$0]  %s720, 16, %s722, %s701
        $region40: #{tpu_custom_call.1} parent=35 // pred_fallthru
          _
        // Predicated region
        $region41: #{tpu_custom_call.1} parent=35 // pred_check
          %p725 = pneg %p172
        $region42: #{tpu_custom_call.1} parent=35 // pred_check_branch
          %727 = sbr.rel (%p725) target = $region44
        $region43: #{tpu_custom_call.1} parent=35 // pred_region
          %729 = vsyncadd %s705, 0
          %s730 = scalar_lea.hbm %s5, %s24
          %s732 = sshll.u32 %s707, 4
          %s733 = int_to_ptr.vmem [resolvable:$true] %s732
          %s734 = sshll.u32 %s730, 4
          %s735 = int_to_ptr.hbm [resolvable:$true] %s734
          %737 = dma.vmem_to_hbm [thread:$0]  %s733, 16, %s735, %s705
        $region44: #{tpu_custom_call.1} parent=35 // pred_fallthru
          _
        // Predicated region
        $region45: #{tpu_custom_call.1} parent=35 // pred_check
          %p738 = pneg %p198
        $region46: #{tpu_custom_call.1} parent=35 // pred_check_branch
          %740 = sbr.rel (%p738) target = $region48
        $region47: #{tpu_custom_call.1} parent=35 // pred_region
          %742 = vsyncadd %s709, 0
          %s743 = scalar_lea.hbm %s6, %s24
          %s745 = sshll.u32 %s711, 4
          %s746 = int_to_ptr.vmem [resolvable:$true] %s745
          %s747 = sshll.u32 %s743, 4
          %s748 = int_to_ptr.hbm [resolvable:$true] %s747
          %750 = dma.vmem_to_hbm [thread:$0]  %s746, 16, %s748, %s709
        $region48: #{tpu_custom_call.1} parent=35 // pred_fallthru
          _
      $region36: #{tpu_custom_call.1} parent=5 // pred_fallthru
        _
      %p751 = scmp.le.s32.totalorder 2, %s19
      // Predicated region
      $region49: #{tpu_custom_call.1} parent=5 // pred_check
        %p752 = pneg %p751
      $region50: #{tpu_custom_call.1} parent=5 // pred_check_branch
        %754 = sbr.rel (%p752) target = $region52
      $region51: #{tpu_custom_call.1} parent=5 // pred_region
        %s755 = ssub.s32 %s19, 2
        // Predicated region
        $region53: #{tpu_custom_call.1} parent=51 // pred_check
          %p756 = pneg %p152
        $region54: #{tpu_custom_call.1} parent=51 // pred_check_branch
          %758 = sbr.rel (%p756) target = $region56
        $region55: #{tpu_custom_call.1} parent=51 // pred_region
          %s759 = sand.u32 %s137, 1
          %s760 = scalar_lea.sflag [#allocation3], %s759
          %s761 = sand.u32 %s137, 1
          %s762 = scalar_lea.vmem [#allocation2], %s761
          %764 = dma.done %s760, 16
        $region56: #{tpu_custom_call.1} parent=51 // pred_fallthru
          _
        // Predicated region
        $region57: #{tpu_custom_call.1} parent=51 // pred_check
          %p765 = pneg %p178
        $region58: #{tpu_custom_call.1} parent=51 // pred_check_branch
          %767 = sbr.rel (%p765) target = $region60
        $region59: #{tpu_custom_call.1} parent=51 // pred_region
          %s768 = sand.u32 %s25, 1
          %s769 = scalar_lea.sflag [#allocation5], %s768
          %s770 = sand.u32 %s163, 1
          %s771 = scalar_lea.vmem [#allocation4], %s770
          %773 = dma.done %s769, 16
        $region60: #{tpu_custom_call.1} parent=51 // pred_fallthru
          _
        // Predicated region
        $region61: #{tpu_custom_call.1} parent=51 // pred_check
          %p774 = pneg %p204
        $region62: #{tpu_custom_call.1} parent=51 // pred_check_branch
          %776 = sbr.rel (%p774) target = $region64
        $region63: #{tpu_custom_call.1} parent=51 // pred_region
          %s777 = sand.u32 %s25, 1
          %s778 = scalar_lea.sflag [#allocation5], %s777
          %s779 = sand.u32 %s189, 1
          %s780 = scalar_lea.vmem [#allocation6], %s779
          %782 = dma.done %s778, 16
        $region64: #{tpu_custom_call.1} parent=51 // pred_fallthru
          _
      $region52: #{tpu_custom_call.1} parent=5 // pred_fallthru
        _
    $region6: #{tpu_custom_call.1} parent=1 // loop_footer
      %s23 = sadd.s32 1, %s19
    $region7: #{tpu_custom_call.1} parent=1 // loop_footer_branch
      %18 = sbr.rel target = $region3
    $region8: #{tpu_custom_call.1} parent=1 // loop_exit
      _
    %783 = vsyncpa [#allocation3], 1
    %s784 = scalar_lea.sflag [#allocation3], 1
    %785 = vsyncpa %s784, 1
    %786 = vsyncpa [#allocation5], 1
    %s787 = scalar_lea.sflag [#allocation5], 1
    %788 = vsyncpa %s787, 1

</llo_original>
